<compile_context>
chip_gen: v5e
topology: v5e:2x2
jax: 0.10.0
libtpu: 0.0.40
codegen_flags: <defaults>
</compile_context>

<pallas_src>
import jax
import jax.numpy as jnp
from jax.experimental import pallas as pl
from jax.experimental.pallas import tpu as pltpu


def _mlp_kernel(x_ref, w_ref, o_ref, act_ref):
    # x_ref:   (tile_n, dim)      input rows (read only at d == 0)
    # w_ref:   (1, dim, dim)      current layer's weights (bf16)
    # o_ref:   (tile_n, dim)      output rows (written only at last d)
    # act_ref: (tile_n, dim) f32  activation carried across depth steps
    d = pl.program_id(1)
    w = w_ref[0]                               # (dim, dim) bf16

    @pl.when(d == 0)
    def _():
        # First layer: no SiLU.  bf16 x bf16 -> f32 accumulator on the MXU.
        act_ref[...] = jnp.dot(x_ref[...].astype(jnp.bfloat16), w,
                               preferred_element_type=jnp.float32)

    @pl.when(d != 0)
    def _():
        a = act_ref[...]                       # f32
        a = a * jax.nn.sigmoid(a)              # SiLU in f32 (sigmoid on EUP)
        act_ref[...] = jnp.dot(a.astype(jnp.bfloat16), w,
                               preferred_element_type=jnp.float32)

    @pl.when(d == pl.num_programs(1) - 1)
    def _():
        o_ref[...] = act_ref[...].astype(o_ref.dtype)


def _choose_tile_n(N, dim, io_itemsize):
    """Largest tile that (a) divides N, (b) is (8,128)-legal, (c) fits a
    ~48 MiB VMEM budget (safe on v7x's 64 MiB/TC), preferring >= 2 grid steps
    so both v7x TensorCores get work."""
    budget = 48 * 1024 * 1024

    def vmem_bytes(t):
        w = 2 * dim * dim * 2                  # one bf16 layer, double-buffered
        xin = 2 * t * dim * io_itemsize        # input tile, double-buffered
        out = 2 * t * dim * io_itemsize        # output tile, double-buffered
        scr = t * dim * 4                      # f32 activation scratch
        return w + xin + out + scr

    candidates = [c for c in (512, 256, 128, 64, 32, 16, 8)
                  if c <= N and N % c == 0 and vmem_bytes(c) <= budget]
    if not candidates:
        return N, vmem_bytes(N)                # full-block exemption path
    for c in candidates:                       # prefer >= 2 parallel steps
        if N // c >= 2:
            return c, vmem_bytes(c)
    return candidates[0], vmem_bytes(candidates[0])


def mlp_forward(x, weights, *, tile_n=None):
    """x: (N, dim) float32; weights: (depth, dim, dim) (cast to bf16 here)."""
    N, dim = x.shape
    depth = weights.shape[0]
    w_bf16 = weights.astype(jnp.bfloat16)

    if tile_n is None:
        tile_n, vmem_needed = _choose_tile_n(N, dim, x.dtype.itemsize)
    else:
        _, vmem_needed = _choose_tile_n(tile_n, dim, x.dtype.itemsize)
    assert N % tile_n == 0

    vmem_limit = int(min(max(int(vmem_needed * 1.5) + (1 << 20), 8 << 20),
                         48 << 20))

    cost = pl.CostEstimate(
        flops=2 * N * dim * dim * depth,
        transcendentals=N * dim * (depth - 1),
        bytes_accessed=x.size * x.dtype.itemsize          # input
        + x.size * x.dtype.itemsize                       # output
        + w_bf16.size * 2,                                # bf16 weights
    )

    grid = (N // tile_n, depth)
    return pl.pallas_call(
        _mlp_kernel,
        out_shape=jax.ShapeDtypeStruct((N, dim), x.dtype),
        grid_spec=pltpu.PrefetchScalarGridSpec(
            num_scalar_prefetch=0,
            grid=grid,
            in_specs=[
                pl.BlockSpec((tile_n, dim), lambda i, d: (i, 0)),
                pl.BlockSpec((1, dim, dim), lambda i, d: (d, 0, 0)),
            ],
            out_specs=pl.BlockSpec((tile_n, dim), lambda i, d: (i, 0)),
            scratch_shapes=[pltpu.VMEM((tile_n, dim), jnp.float32)],
        ),
        compiler_params=pltpu.CompilerParams(
            dimension_semantics=("parallel", "arbitrary"),
            vmem_limit_bytes=vmem_limit,
        ),
        cost_estimate=cost,
    )(x, w_bf16)


def mlp_reference(x, weights):
    """Same mixed-precision recipe as the kernel (bf16 matmul operands,
    f32 accumulation, f32 SiLU) so the comparison tolerance can stay tight."""
    w_bf16 = weights.astype(jnp.bfloat16)
    a = None
    for d in range(w_bf16.shape[0]):
        if d == 0:
            a = jnp.dot(x.astype(jnp.bfloat16), w_bf16[d],
                        preferred_element_type=jnp.float32)
        else:
            a = a * jax.nn.sigmoid(a)
            a = jnp.dot(a.astype(jnp.bfloat16), w_bf16[d],
                        preferred_element_type=jnp.float32)
    return a.astype(x.dtype)


if __name__ == "__main__":
    key = jax.random.PRNGKey(0)
    dim, depth = 128, 3
    N = 16  # e.g. batch=2 * seq=8 tokens flattened to rows

    kx, kw = jax.random.split(key)
    x = jax.random.normal(kx, (N, dim), dtype=jnp.float32)
    # deterministic stand-in for torch.randn(dim, dim) per layer
    weights = jax.random.normal(kw, (depth, dim, dim), dtype=jnp.float32)

    out = mlp_forward(x, weights)
    jax.block_until_ready(out)

    ref = mlp_reference(x, weights)
    assert out.shape == (N, dim)
    # bf16 MXU operands => compare against the matched-precision reference.
    assert jnp.allclose(out, ref, rtol=2e-2, atol=1e-2), "mismatch vs reference"

    print("KERNEL_OK")
</pallas_src>

<mosaic_0001>
module attributes {stable_mosaic.version = 11 : i64} {
  func.func @_mlp_kernel(%arg0: i32, %arg1: i32, %arg2: memref<8x128xf32, #tpu.memory_space<vmem>>, %arg3: memref<1x128x128xbf16, #tpu.memory_space<vmem>>, %arg4: memref<8x128xf32, #tpu.memory_space<vmem>>, %arg5: memref<8x128xf32, #tpu.memory_space<vmem>>) attributes {dimension_semantics = [#tpu.dimension_semantics<parallel>, #tpu.dimension_semantics<arbitrary>], iteration_bounds = array<i64: 2, 3>, scalar_prefetch = 0 : i64, scratch_operands = 1 : i64, tpu.core_type = #tpu.core_type<tc>, window_params = [{transform_indices = @transform_0, window_bounds = array<i64: 8, 128>}, {transform_indices = @transform_1, window_bounds = array<i64: 1, 128, 128>}, {transform_indices = @transform_2, window_bounds = array<i64: 8, 128>}]} {
    %c0 = arith.constant 0 : index
    %c0_0 = arith.constant 0 : index
    %c0_1 = arith.constant 0 : index
    %0 = vector.load %arg3[%c0, %c0_0, %c0_1] : memref<1x128x128xbf16, #tpu.memory_space<vmem>>, vector<1x128x128xbf16>
    %1 = vector.shape_cast %0 : vector<1x128x128xbf16> to vector<128x128xbf16>
    %c0_i32 = arith.constant 0 : i32
    %2 = arith.cmpi eq, %arg1, %c0_i32 : i32
    %3 = arith.extui %2 : i1 to i32
    %c0_i32_2 = arith.constant 0 : i32
    %4 = arith.cmpi ne, %3, %c0_i32_2 : i32
    scf.if %4 {
      %c0_6 = arith.constant 0 : index
      %c0_7 = arith.constant 0 : index
      %11 = vector.load %arg2[%c0_6, %c0_7] : memref<8x128xf32, #tpu.memory_space<vmem>>, vector<8x128xf32>
      %12 = arith.truncf %11 : vector<8x128xf32> to vector<8x128xbf16>
      %cst = arith.constant dense<0.000000e+00> : vector<8x128xf32>
      %13 = tpu.matmul %12, %1, %cst {dimension_numbers = #tpu.dot_dimension_numbers<[1], [0], [0], [1], [0, 0, 1, 1], [], []>} : vector<8x128xbf16>, vector<128x128xbf16>, vector<8x128xf32> -> vector<8x128xf32>
      %c0_8 = arith.constant 0 : index
      %c0_9 = arith.constant 0 : index
      %14 = vector.load %arg5[%c0_8, %c0_9] : memref<8x128xf32, #tpu.memory_space<vmem>>, vector<8x128xf32>
      tpu.vector_store %arg5[%c0_8, %c0_9], %13 {strides = array<i32>} : memref<8x128xf32, #tpu.memory_space<vmem>>, vector<8x128xf32>,
    } else {
    }
    %c0_i32_3 = arith.constant 0 : i32
    %5 = arith.cmpi ne, %arg1, %c0_i32_3 : i32
    %6 = arith.extui %5 : i1 to i32
    %c0_i32_4 = arith.constant 0 : i32
    %7 = arith.cmpi ne, %6, %c0_i32_4 : i32
    scf.if %7 {
      %c0_6 = arith.constant 0 : index
      %c0_7 = arith.constant 0 : index
      %11 = vector.load %arg5[%c0_6, %c0_7] : memref<8x128xf32, #tpu.memory_space<vmem>>, vector<8x128xf32>
      %12 = arith.negf %11 : vector<8x128xf32>
      %13 = math.exp %12 : vector<8x128xf32>
      %cst = arith.constant 1.000000e+00 : f32
      %14 = vector.broadcast %cst : f32 to vector<8x128xf32>
      %15 = arith.addf %14, %13 : vector<8x128xf32>
      %16 = arith.divf %14, %15 : vector<8x128xf32>
      %17 = arith.mulf %11, %16 : vector<8x128xf32>
      %18 = arith.truncf %17 : vector<8x128xf32> to vector<8x128xbf16>
      %cst_8 = arith.constant dense<0.000000e+00> : vector<8x128xf32>
      %19 = tpu.matmul %18, %1, %cst_8 {dimension_numbers = #tpu.dot_dimension_numbers<[1], [0], [0], [1], [0, 0, 1, 1], [], []>} : vector<8x128xbf16>, vector<128x128xbf16>, vector<8x128xf32> -> vector<8x128xf32>
      %c0_9 = arith.constant 0 : index
      %c0_10 = arith.constant 0 : index
      %20 = vector.load %arg5[%c0_9, %c0_10] : memref<8x128xf32, #tpu.memory_space<vmem>>, vector<8x128xf32>
      tpu.vector_store %arg5[%c0_9, %c0_10], %19 {strides = array<i32>} : memref<8x128xf32, #tpu.memory_space<vmem>>, vector<8x128xf32>,
    } else {
    }
    %c2_i32 = arith.constant 2 : i32
    %8 = arith.cmpi eq, %arg1, %c2_i32 : i32
    %9 = arith.extui %8 : i1 to i32
    %c0_i32_5 = arith.constant 0 : i32
    %10 = arith.cmpi ne, %9, %c0_i32_5 : i32
    scf.if %10 {
      %c0_6 = arith.constant 0 : index
      %c0_7 = arith.constant 0 : index
      %11 = vector.load %arg5[%c0_6, %c0_7] : memref<8x128xf32, #tpu.memory_space<vmem>>, vector<8x128xf32>
      %c0_8 = arith.constant 0 : index
      %c0_9 = arith.constant 0 : index
      %12 = vector.load %arg4[%c0_8, %c0_9] : memref<8x128xf32, #tpu.memory_space<vmem>>, vector<8x128xf32>
      tpu.vector_store %arg4[%c0_8, %c0_9], %11 {strides = array<i32>} : memref<8x128xf32, #tpu.memory_space<vmem>>, vector<8x128xf32>,
    } else {
    }
    return
  }
  func.func @transform_0(%arg0: i32, %arg1: i32) -> (i32, i32) {
    %c0_i32 = arith.constant 0 : i32
    %c0_i32_0 = arith.constant 0 : i32
    return %arg0, %c0_i32 : i32, i32
  }
  func.func @transform_1(%arg0: i32, %arg1: i32) -> (i32, i32, i32) {
    %c0_i32 = arith.constant 0 : i32
    %c0_i32_0 = arith.constant 0 : i32
    %c0_i32_1 = arith.constant 0 : i32
    return %arg1, %c0_i32, %c0_i32_0 : i32, i32, i32
  }
  func.func @transform_2(%arg0: i32, %arg1: i32) -> (i32, i32) {
    %c0_i32 = arith.constant 0 : i32
    %c0_i32_0 = arith.constant 0 : i32
    return %arg0, %c0_i32 : i32, i32
  }
}

</mosaic_0001>

<llo_original>
// kernel: tpu_custom_call.1
$region0: #{tpu_custom_call.1}
  #allocation0 [shape = 'u32[]', space=smem, size = 0x4, offset = 0x4, fixed_abs, tag = 'smem constant byte address 0x4 - core index']
  #allocation1 [shape = 'u32[72,128]{1,0:T(1,128)}', space=vmem, size = 0x9000, scoped, tag = 'internal scratch']
  #allocation2 [shape = 'f32[8,128]{1,0:T(8,128)}', space=vmem, size = 0x1000, scoped, tag = 'scratch operand']
  %s0 = inlined_call_operand.hbm [shape: f32[16,128], index: 0, kind: input, shape index: {}]
  %s1 = inlined_call_operand.hbm [shape: bf16[3,128,128], index: 1, kind: input, shape index: {}]
  %s2 = inlined_call_operand.hbm [shape: f32[16,128], index: 2, kind: output, shape index: {}]
  %s3 = sld [smem:[#allocation0]]
  $region61: #{tpu_custom_call.1} parent=0
    _
  %s5 = ssub.s32 1, %s3
  %s6 = scalar_select 0, %s5, %s3
  $region1: #{tpu_custom_call.1} parent=0
    #allocation3 [shape = 'u8[8192]{0}', space=vmem, size = 0x2000, scoped, tag = 'input window, operand 0']
    #allocation4 [shape = 's32[2]{0}', space=sflag, size = 0x8, scoped, tag = 'scoped memory for tpu_custom_call.1']
    #allocation5 [shape = 's32[2]{0}', space=sflag, size = 0x8, scoped, tag = 'scoped memory for tpu_custom_call.1']
    #allocation6 [shape = 'u8[65536]{0}', space=vmem, size = 0x10000, scoped, tag = 'input window, operand 1']
    #allocation7 [shape = 's32[2]{0}', space=sflag, size = 0x8, scoped, tag = 'scoped memory for tpu_custom_call.1']
    #allocation8 [shape = 'u8[8192]{0}', space=vmem, size = 0x2000, scoped, tag = 'output window, operand 0']
    %7 = vsyncpa [#allocation4], 0
    %s8 = scalar_lea.sflag [#allocation4], 1
    %9 = vsyncpa %s8, 0
    %10 = vsyncpa [#allocation7], 0
    %s11 = scalar_lea.sflag [#allocation7], 1
    %12 = vsyncpa %s11, 0
    %13 = vsyncpa [#allocation5], 0
    %s14 = scalar_lea.sflag [#allocation5], 1
    %15 = vsyncpa %s14, 0
    loop: start=0, step=1, limit=8
    $region2: #{tpu_custom_call.1} parent=1 // loop_pre_header
      _
    $region3: #{tpu_custom_call.1} parent=1 // loop_header
      %s17 = sphi 0, %s21
      %p18 = scmp.ge.s32.totalorder %s17, 8
      %s24 = sphi 0, %s36
      %s25 = sphi 0, %s32
      %s26 = sphi 0, %s24
      %s27 = sphi 0, %s25
      %s28 = sphi 0, %s26
      %s29 = sphi 0, %s27
      %s39 = sphi 0, %s41
      %s42 = sphi 0, %s39
      %s43 = sphi 0, %s42
      %s59 = sphi 0, %s43
      %s65 = sphi 0, %s67
      %s68 = sphi 0, %s65
      %s69 = sphi 0, %s68
      %s85 = sphi 0, %s69
      %s91 = sphi 0, %s93
      %s94 = sphi 0, %s91
      %s95 = sphi 0, %s94
      %s111 = sphi 0, %s95
    $region4: #{tpu_custom_call.1} parent=1 // loop_header_branch
      %20 = sbr.rel (%p18) target = $region8
    $region5: #{tpu_custom_call.1} parent=1 // loop_body
      %s22 = ssub.s32 %s17, 1
      %s23 = ssub.s32 %s17, 2
      %s30 = sadd.s32 1, %s25
      %p31 = scmp.ge.s32.totalorder %s30, 3
      %s32 = scalar_select %p31, 0, %s30
      %s33 = sadd.s32 1, %s24
      %s34 = scalar_select %p31, %s33, %s24
      %p35 = scmp.ge.s32.totalorder %s34, 2
      %s36 = scalar_select %p35, 0, %s34
      %s37 = ssub.s32 %s24, %s36
      %p38 = scmp.eq.s32.totalorder %s37, 0
      %s40 = sadd.s32 %s39, 1
      %s41 = scalar_select %p38, %s39, %s40
      %p44 = pneg %p38
      %p45 = scmp.eq.s32.totalorder %s17, 5
      %p46 = por %p44, %p45
      %p47 = scmp.ne.s32.totalorder %s39, %s42
      %p48 = scmp.eq.s32.totalorder %s17, 0
      %p49 = por %p47, %p48
      %p50 = scmp.ne.s32.totalorder %s39, %s42
      %p51 = scmp.eq.s32.totalorder %s22, 5
      %p52 = por %p50, %p51
      %p53 = scmp.ne.s32.totalorder %s42, %s43
      %p54 = scmp.eq.s32.totalorder %s22, 0
      %p55 = por %p53, %p54
      %p56 = scmp.ne.s32.totalorder %s42, %s43
      %p57 = scmp.eq.s32.totalorder %s23, 5
      %p58 = por %p56, %p57
      %p60 = scmp.ne.s32.totalorder %s43, %s59
      %p61 = scmp.eq.s32.totalorder %s23, 0
      %p62 = por %p60, %p61
      %s63 = ssub.s32 %s25, %s32
      %p64 = scmp.eq.s32.totalorder %s63, 0
      %s66 = sadd.s32 %s65, 1
      %s67 = scalar_select %p64, %s65, %s66
      %p70 = pneg %p64
      %p71 = scmp.eq.s32.totalorder %s17, 5
      %p72 = por %p70, %p71
      %p73 = scmp.ne.s32.totalorder %s65, %s68
      %p74 = scmp.eq.s32.totalorder %s17, 0
      %p75 = por %p73, %p74
      %p76 = scmp.ne.s32.totalorder %s65, %s68
      %p77 = scmp.eq.s32.totalorder %s22, 5
      %p78 = por %p76, %p77
      %p79 = scmp.ne.s32.totalorder %s68, %s69
      %p80 = scmp.eq.s32.totalorder %s22, 0
      %p81 = por %p79, %p80
      %p82 = scmp.ne.s32.totalorder %s68, %s69
      %p83 = scmp.eq.s32.totalorder %s23, 5
      %p84 = por %p82, %p83
      %p86 = scmp.ne.s32.totalorder %s69, %s85
      %p87 = scmp.eq.s32.totalorder %s23, 0
      %p88 = por %p86, %p87
      %s89 = ssub.s32 %s24, %s36
      %p90 = scmp.eq.s32.totalorder %s89, 0
      %s92 = sadd.s32 %s91, 1
      %s93 = scalar_select %p90, %s91, %s92
      %p96 = pneg %p90
      %p97 = scmp.eq.s32.totalorder %s17, 5
      %p98 = por %p96, %p97
      %p99 = scmp.ne.s32.totalorder %s91, %s94
      %p100 = scmp.eq.s32.totalorder %s17, 0
      %p101 = por %p99, %p100
      %p102 = scmp.ne.s32.totalorder %s91, %s94
      %p103 = scmp.eq.s32.totalorder %s22, 5
      %p104 = por %p102, %p103
      %p105 = scmp.ne.s32.totalorder %s94, %s95
      %p106 = scmp.eq.s32.totalorder %s22, 0
      %p107 = por %p105, %p106
      %p108 = scmp.ne.s32.totalorder %s94, %s95
      %p109 = scmp.eq.s32.totalorder %s23, 5
      %p110 = por %p108, %p109
      %p112 = scmp.ne.s32.totalorder %s95, %s111
      %p113 = scmp.eq.s32.totalorder %s23, 0
      %p114 = por %p112, %p113
      %p115 = scmp.le.s32.totalorder 1, %s17
      %p116 = scmp.lt.s32.totalorder %s17, 7
      %p117 = pnand %p115, %p116
      %p118 = pneg %p117
      // Predicated region
      $region9: #{tpu_custom_call.1} parent=5 // pred_check
        _
      $region10: #{tpu_custom_call.1} parent=5 // pred_check_branch
        %120 = sbr.rel (%p117) target = $region12
      $region11: #{tpu_custom_call.1} parent=5 // pred_region
        %s121 = ssub.s32 %s17, 1
      $region12: #{tpu_custom_call.1} parent=5 // pred_fallthru
        _
      %p122 = scmp.lt.s32.totalorder %s17, 6
      // Predicated region
      $region13: #{tpu_custom_call.1} parent=5 // pred_check
        %p123 = pneg %p122
      $region14: #{tpu_custom_call.1} parent=5 // pred_check_branch
        %125 = sbr.rel (%p123) target = $region16
      $region15: #{tpu_custom_call.1} parent=5 // pred_region
        // Predicated region
        $region17: #{tpu_custom_call.1} parent=15 // pred_check
          %p126 = pneg %p49
        $region18: #{tpu_custom_call.1} parent=15 // pred_check_branch
          %128 = sbr.rel (%p126) target = $region20
        $region19: #{tpu_custom_call.1} parent=15 // pred_region
          %s129 = sand.u32 %s39, 1
          %s130 = scalar_lea.sflag [#allocation4], %s129
          %s131 = sand.u32 %s39, 1
          %s132 = smul.addr %s131, 8
          %s133 = scalar_lea.vmem [#allocation3], %s132
          %135 = vsyncadd %s130, 0
          %s136 = smul.addr %s24, 8
          %s137 = scalar_lea.hbm %s0, %s136
          %s139 = sshll.u32 %s137, 4
          %s140 = int_to_ptr.hbm [resolvable:$true] %s139
          %s141 = sshll.u32 %s133, 4
          %s142 = int_to_ptr.vmem [resolvable:$true] %s141
          %144 = dma.hbm_to_vmem [thread:$0]  %s140, 128, %s142, %s130
        $region20: #{tpu_custom_call.1} parent=15 // pred_fallthru
          _
        // Predicated region
        $region21: #{tpu_custom_call.1} parent=15 // pred_check
          %p145 = pneg %p75
        $region22: #{tpu_custom_call.1} parent=15 // pred_check_branch
          %147 = sbr.rel (%p145) target = $region24
        $region23: #{tpu_custom_call.1} parent=15 // pred_region
          %s148 = sand.u32 %s65, 1
          %s149 = scalar_lea.sflag [#allocation7], %s148
          %s150 = sand.u32 %s65, 1
          %s151 = smul.addr %s150, 64
          %s152 = scalar_lea.vmem [#allocation6], %s151
          %154 = vsyncadd %s149, 0
          %s155 = smul.addr %s25, 16
          %s156 = smul.addr %s155, 4
          %s157 = scalar_lea.hbm %s1, %s156
          %s158 = sshll.u32 %s157, 4
          %s159 = int_to_ptr.hbm [resolvable:$true] %s158
          %s160 = sshll.u32 %s152, 4
          %s161 = int_to_ptr.vmem [resolvable:$true] %s160
          %166 = dma.hbm_to_vmem [thread:$0]  %s159, 1024, %s161, %s149, 64, 64, 4
        $region24: #{tpu_custom_call.1} parent=15 // pred_fallthru
          _
      $region16: #{tpu_custom_call.1} parent=5 // pred_fallthru
        _
      %p167 = scmp.le.s32.totalorder 1, %s17
      %p168 = scmp.lt.s32.totalorder %s17, 7
      %p169 = pnand %p167, %p168
      %p170 = pneg %p169
      // Predicated region
      $region25: #{tpu_custom_call.1} parent=5 // pred_check
        _
      $region26: #{tpu_custom_call.1} parent=5 // pred_check_branch
        %172 = sbr.rel (%p169) target = $region28
      $region27: #{tpu_custom_call.1} parent=5 // pred_region
        %s173 = ssub.s32 %s17, 1
        %s174 = sand.u32 %s42, 1
        %s175 = scalar_lea.sflag [#allocation4], %s174
        %s176 = sand.u32 %s42, 1
        %s177 = smul.addr %s176, 8
        %s178 = scalar_lea.vmem [#allocation3], %s177
        // Predicated region
        $region29: #{tpu_custom_call.1} parent=27 // pred_check
          %p179 = pneg %p55
        $region30: #{tpu_custom_call.1} parent=27 // pred_check_branch
          %181 = sbr.rel (%p179) target = $region32
        $region31: #{tpu_custom_call.1} parent=27 // pred_region
          %183 = dma.done %s175, 128
        $region32: #{tpu_custom_call.1} parent=27 // pred_fallthru
          _
        %s184 = sand.u32 %s68, 1
        %s185 = scalar_lea.sflag [#allocation7], %s184
        %s186 = sand.u32 %s68, 1
        %s187 = smul.addr %s186, 64
        %s188 = scalar_lea.vmem [#allocation6], %s187
        // Predicated region
        $region33: #{tpu_custom_call.1} parent=27 // pred_check
          %p189 = pneg %p81
        $region34: #{tpu_custom_call.1} parent=27 // pred_check_branch
          %191 = sbr.rel (%p189) target = $region36
        $region35: #{tpu_custom_call.1} parent=27 // pred_region
          %193 = dma.done %s185, 1024
        $region36: #{tpu_custom_call.1} parent=27 // pred_fallthru
          _
        %s194 = sand.u32 %s42, 1
        %s195 = scalar_lea.sflag [#allocation4], %s194
        %s196 = sand.u32 %s42, 1
        %s197 = smul.addr %s196, 8
        %s198 = scalar_lea.vmem [#allocation3], %s197
        %p199 = pneg %p55
        %p200 = pneg %p52
        %s201 = sand.u32 %s68, 1
        %s202 = scalar_lea.sflag [#allocation7], %s201
        %s203 = sand.u32 %s68, 1
        %s204 = smul.addr %s203, 64
        %s205 = scalar_lea.vmem [#allocation6], %s204
        %p206 = pneg %p81
        %p207 = pneg %p78
        %p208 = pneg %p107
        %p209 = pneg %p104
        %s210 = sand.u32 %s94, 1
        %s211 = scalar_lea.sflag [#allocation5], %s210
        %s212 = sand.u32 %s94, 1
        %s213 = smul.addr %s212, 8
        %s214 = scalar_lea.vmem [#allocation8], %s213
        %v215 = vld [vmem:[%s188] sm:$0xf]
        %v216 = vld [vmem:[%s188 + $0x4] sm:$0xf]
        %v217 = vld [vmem:[%s188 + $0x8] sm:$0xf]
        %v218 = vld [vmem:[%s188 + $0xc] sm:$0xf]
        %v219 = vld [vmem:[%s188 + $0x10] sm:$0xf]
        %v220 = vld [vmem:[%s188 + $0x14] sm:$0xf]
        %v221 = vld [vmem:[%s188 + $0x18] sm:$0xf]
        %v222 = vld [vmem:[%s188 + $0x1c] sm:$0xf]
        %v223 = vld [vmem:[%s188 + $0x20] sm:$0xf]
        %v224 = vld [vmem:[%s188 + $0x24] sm:$0xf]
        %v225 = vld [vmem:[%s188 + $0x28] sm:$0xf]
        %v226 = vld [vmem:[%s188 + $0x2c] sm:$0xf]
        %v227 = vld [vmem:[%s188 + $0x30] sm:$0xf]
        %v228 = vld [vmem:[%s188 + $0x34] sm:$0xf]
        %v229 = vld [vmem:[%s188 + $0x38] sm:$0xf]
        %v230 = vld [vmem:[%s188 + $0x3c] sm:$0xf]
        %p231 = scmp.eq.s32.totalorder %s27, 0
        // Predicated region
        $region37: #{tpu_custom_call.1} parent=27 // pred_check
          %p232 = pneg %p231
        $region38: #{tpu_custom_call.1} parent=27 // pred_check_branch
          %234 = sbr.rel (%p232) target = $region40
        $region39: #{tpu_custom_call.1} parent=27 // pred_region
          %v235 = vld [vmem:[%s178] sm:$0xff]
          %v236 = vpack.c.bf16 %v235, %v235
          %v253 = vunpack.c.l.b16 %v215
          %v254 = vunpack.c.l.b16 %v216
          %v255 = vunpack.c.l.b16 %v217
          %v256 = vunpack.c.l.b16 %v218
          %v257 = vunpack.c.l.b16 %v219
          %v258 = vunpack.c.l.b16 %v220
          %v259 = vunpack.c.l.b16 %v221
          %v260 = vunpack.c.l.b16 %v222
          %v261 = vunpack.c.l.b16 %v223
          %v262 = vunpack.c.l.b16 %v224
          %v263 = vunpack.c.l.b16 %v225
          %v264 = vunpack.c.l.b16 %v226
          %v265 = vunpack.c.l.b16 %v227
          %v266 = vunpack.c.l.b16 %v228
          %v267 = vunpack.c.l.b16 %v229
          %v268 = vunpack.c.l.b16 %v230
          %v269 = vpack.c.b16 %v254, %v253
          %v270 = vpack.c.b16 %v256, %v255
          %v271 = vpack.c.b16 %v258, %v257
          %v272 = vpack.c.b16 %v260, %v259
          %v273 = vpack.c.b16 %v262, %v261
          %v274 = vpack.c.b16 %v264, %v263
          %v275 = vpack.c.b16 %v266, %v265
          %v276 = vpack.c.b16 %v268, %v267
          %285 = vmatpush.bf16.msra.mxu0 %v276
          %286 = vmatpush.bf16.msra.mxu0 %v275
          %287 = vmatpush.bf16.msra.mxu0 %v274
          %288 = vmatpush.bf16.msra.mxu0 %v273
          %289 = vmatpush.bf16.msra.mxu0 %v272
          %290 = vmatpush.bf16.msra.mxu0 %v271
          %291 = vmatpush.bf16.msra.mxu0 %v270
          %292 = vmatpush.bf16.msra.mxu0 %v269
          %293 = vmatmul.bf16.gmra.mxu0 %v236
          %v294 = vpop.f32.mrf.mxu0
          %v295 = vadd.f32 0.0, %v294
          %v296 = vpop.f32.mrf.mxu0
          %297 = vdwg.mxu0
          %298 = vst [vmem:[#allocation2] sm:$0xff] %v295
        $region40: #{tpu_custom_call.1} parent=27 // pred_fallthru
          _
        %p299 = scmp.ne.s32.totalorder %s27, 0
        // Predicated region
        $region41: #{tpu_custom_call.1} parent=27 // pred_check
          %p300 = pneg %p299
        $region42: #{tpu_custom_call.1} parent=27 // pred_check_branch
          %302 = sbr.rel (%p300) target = $region44
        $region43: #{tpu_custom_call.1} parent=27 // pred_region
          %v303 = vld [vmem:[#allocation2] sm:$0xff]
          %v304 = vxor.u32 %v303, 2147483648
          %v305 = vmul.f32 %v304, 1.442695
          %v306 = vpow.pop %v305
          %v307 = vadd.f32 %v306, 1.0
          %v308 = vrcp.pop %v307
          %v309 = vmul.f32 %v307, %v308
          %v310 = vsub.f32 1.0, %v309
          %v311 = vmul.f32 %v308, %v310
          %v312 = vadd.f32 %v308, %v311
          %vm313 = vweird.f32 %v307
          %vm314 = vweird.f32 %v308
          %vm315 = vmor %vm313, %vm314
          %v316 = vsel %vm315, %v308, %v312
          %v317 = vand.u32 2147483647, %v307
          %vm318 = vcmp.eq.f32.partialorder %v317, 8.507059e+37
          %v319 = vand.u32 %v307, 2147483648
          %v320 = vor.u32 1.1754944e-38, %v319
          %v321 = vsel %vm318, %v320, %v316
          %v322 = vmul.f32 1.0, %v321
          %v323 = vmul.f32 %v303, %v322
          %v324 = vpack.c.bf16 %v323, %v323
          %v341 = vunpack.c.l.b16 %v215
          %v342 = vunpack.c.l.b16 %v216
          %v343 = vunpack.c.l.b16 %v217
          %v344 = vunpack.c.l.b16 %v218
          %v345 = vunpack.c.l.b16 %v219
          %v346 = vunpack.c.l.b16 %v220
          %v347 = vunpack.c.l.b16 %v221
          %v348 = vunpack.c.l.b16 %v222
          %v349 = vunpack.c.l.b16 %v223
          %v350 = vunpack.c.l.b16 %v224
          %v351 = vunpack.c.l.b16 %v225
          %v352 = vunpack.c.l.b16 %v226
          %v353 = vunpack.c.l.b16 %v227
          %v354 = vunpack.c.l.b16 %v228
          %v355 = vunpack.c.l.b16 %v229
          %v356 = vunpack.c.l.b16 %v230
          %v357 = vpack.c.b16 %v342, %v341
          %v358 = vpack.c.b16 %v344, %v343
          %v359 = vpack.c.b16 %v346, %v345
          %v360 = vpack.c.b16 %v348, %v347
          %v361 = vpack.c.b16 %v350, %v349
          %v362 = vpack.c.b16 %v352, %v351
          %v363 = vpack.c.b16 %v354, %v353
          %v364 = vpack.c.b16 %v356, %v355
          %373 = vmatpush.bf16.msra.mxu0 %v364
          %374 = vmatpush.bf16.msra.mxu0 %v363
          %375 = vmatpush.bf16.msra.mxu0 %v362
          %376 = vmatpush.bf16.msra.mxu0 %v361
          %377 = vmatpush.bf16.msra.mxu0 %v360
          %378 = vmatpush.bf16.msra.mxu0 %v359
          %379 = vmatpush.bf16.msra.mxu0 %v358
          %380 = vmatpush.bf16.msra.mxu0 %v357
          %381 = vmatmul.bf16.gmra.mxu0 %v324
          %v382 = vpop.f32.mrf.mxu0
          %v383 = vadd.f32 0.0, %v382
          %v384 = vpop.f32.mrf.mxu0
          %385 = vdwg.mxu0
          %386 = vst [vmem:[#allocation2] sm:$0xff] %v383
        $region44: #{tpu_custom_call.1} parent=27 // pred_fallthru
          _
        %p387 = scmp.eq.s32.totalorder %s27, 2
        // Predicated region
        $region45: #{tpu_custom_call.1} parent=27 // pred_check
          %p388 = pneg %p387
        $region46: #{tpu_custom_call.1} parent=27 // pred_check_branch
          %390 = sbr.rel (%p388) target = $region48
        $region47: #{tpu_custom_call.1} parent=27 // pred_region
          %v391 = vld [vmem:[#allocation2] sm:$0xff]
          %392 = vst [vmem:[%s214] sm:$0xff] %v391
        $region48: #{tpu_custom_call.1} parent=27 // pred_fallthru
          _
        %s393 = sand.u32 %s94, 1
        %s394 = scalar_lea.sflag [#allocation5], %s393
        %s395 = sand.u32 %s94, 1
        %s396 = smul.addr %s395, 8
        %s397 = scalar_lea.vmem [#allocation8], %s396
        // Predicated region
        $region49: #{tpu_custom_call.1} parent=27 // pred_check
          %p398 = pneg %p104
        $region50: #{tpu_custom_call.1} parent=27 // pred_check_branch
          %400 = sbr.rel (%p398) target = $region52
        $region51: #{tpu_custom_call.1} parent=27 // pred_region
          %402 = vsyncadd %s394, 0
          %s403 = smul.addr %s26, 8
          %s404 = scalar_lea.hbm %s2, %s403
          %s406 = sshll.u32 %s397, 4
          %s407 = int_to_ptr.vmem [resolvable:$true] %s406
          %s408 = sshll.u32 %s404, 4
          %s409 = int_to_ptr.hbm [resolvable:$true] %s408
          %411 = dma.vmem_to_hbm [thread:$0]  %s407, 128, %s409, %s394
        $region52: #{tpu_custom_call.1} parent=27 // pred_fallthru
          _
      $region28: #{tpu_custom_call.1} parent=5 // pred_fallthru
        _
      %p412 = scmp.le.s32.totalorder 2, %s17
      // Predicated region
      $region53: #{tpu_custom_call.1} parent=5 // pred_check
        %p413 = pneg %p412
      $region54: #{tpu_custom_call.1} parent=5 // pred_check_branch
        %415 = sbr.rel (%p413) target = $region56
      $region55: #{tpu_custom_call.1} parent=5 // pred_region
        %s416 = ssub.s32 %s17, 2
        // Predicated region
        $region57: #{tpu_custom_call.1} parent=55 // pred_check
          %p417 = pneg %p110
        $region58: #{tpu_custom_call.1} parent=55 // pred_check_branch
          %419 = sbr.rel (%p417) target = $region60
        $region59: #{tpu_custom_call.1} parent=55 // pred_region
          %s420 = sand.u32 %s95, 1
          %s421 = scalar_lea.sflag [#allocation5], %s420
          %s422 = sand.u32 %s95, 1
          %s423 = smul.addr %s422, 8
          %s424 = scalar_lea.vmem [#allocation8], %s423
          %426 = dma.done %s421, 128
        $region60: #{tpu_custom_call.1} parent=55 // pred_fallthru
          _
      $region56: #{tpu_custom_call.1} parent=5 // pred_fallthru
        _
    $region6: #{tpu_custom_call.1} parent=1 // loop_footer
      %s21 = sadd.s32 1, %s17
    $region7: #{tpu_custom_call.1} parent=1 // loop_footer_branch
      %16 = sbr.rel target = $region3
    $region8: #{tpu_custom_call.1} parent=1 // loop_exit
      _
    %427 = vsyncpa [#allocation4], 1
    %s428 = scalar_lea.sflag [#allocation4], 1
    %429 = vsyncpa %s428, 1
    %430 = vsyncpa [#allocation7], 1
    %s431 = scalar_lea.sflag [#allocation7], 1
    %432 = vsyncpa %s431, 1
    %433 = vsyncpa [#allocation5], 1
    %s434 = scalar_lea.sflag [#allocation5], 1
    %435 = vsyncpa %s434, 1

</llo_original>
